<compile_context>
chip_gen: v7x
topology: tpu7x:2x2x1
jax: 0.10.0
libtpu: 0.0.40
codegen_flags: <defaults>
</compile_context>

<pallas_src>
import jax
import jax.numpy as jnp
from jax import lax
from jax.experimental import pallas as pl
from jax.experimental.pallas import tpu as pltpu


def _round_up(n, m):
    return ((n + m - 1) // m) * m


def _make_kernel(hidden_size, seq_len, batch_padded):
    """Builds the LSTM kernel closed over static sizes (H, T, Bp)."""
    H, T, Bp = hidden_size, seq_len, batch_padded

    def kernel(x_ref, wih_ref, whh_ref, b_ref, wfc_ref, bfc_ref, out_ref, hs_ref):
        """Packed-gate LSTM recurrence (vreg-carried f32 state) + hoisted FC/sigmoid.

        x_ref   : (Bp, D_in)   f32   input features (same at every timestep)
        wih_ref : (D_in, 4H)   bf16  W_ih^T, packed gate order [i|f|g|o]
        whh_ref : (H, 4H)      bf16  W_hh^T, packed gate order [i|f|g|o]
        b_ref   : (1, 4H)      f32   b_ih + b_hh
        wfc_ref : (H, Ep)      bf16  W_fc^T, lane-padded
        bfc_ref : (1, Ep)      f32   fc bias, lane-padded
        out_ref : (T*Bp, Ep)   f32   sigmoid(fc(h_t)), time-major, lane-dense store
        hs_ref  : (T*Bp, H)    f32   scratch: per-step hidden state
        """
        bf16 = jnp.bfloat16

        whh = whh_ref[...]                                   # hoisted, reused by all steps
        bias = b_ref[...]

        # Input is repeated across time -> the input projection is time-invariant.
        xW = jnp.dot(x_ref[...].astype(bf16), wih_ref[...],
                     preferred_element_type=jnp.float32) + bias        # (Bp, 4H) f32

        def step(t, carry):
            h, c = carry                                     # f32 (Bp, H)
            gates = xW + jnp.dot(h.astype(bf16), whh,
                                 preferred_element_type=jnp.float32)   # (Bp, 4H) f32
            # One whole-vreg sigmoid + one whole-vreg tanh over the packed gates,
            # then static H-lane extracts (PyTorch gate order: i, f, g, o).
            sig = jax.nn.sigmoid(gates)
            tnh = jnp.tanh(gates)
            i_g = sig[:, 0 * H:1 * H]
            f_g = sig[:, 1 * H:2 * H]
            g_g = tnh[:, 2 * H:3 * H]
            o_g = sig[:, 3 * H:4 * H]
            c_new = f_g * c + i_g * g_g
            h_new = o_g * jnp.tanh(c_new)
            # Stash h_t for the hoisted FC; off the serial h->h dependency chain.
            off = pl.multiple_of(t * Bp, Bp)
            hs_ref[pl.ds(off, Bp), :] = h_new
            return h_new, c_new

        h0 = jnp.zeros((Bp, H), jnp.float32)
        c0 = jnp.zeros((Bp, H), jnp.float32)
        lax.fori_loop(0, T, step, (h0, c0), unroll=True)

        # FC + sigmoid hoisted out of the recurrence: one matmul, one lane-dense store.
        logits = jnp.dot(hs_ref[...].astype(bf16), wfc_ref[...],
                         preferred_element_type=jnp.float32) + bfc_ref[...]
        out_ref[...] = jax.nn.sigmoid(logits)

    return kernel


def prepare_params(params):
    """One-time parameter packing — runs at model load, NOT on the per-call path.

    Returns bf16 matmul operands in the layouts the kernel expects.
    """
    f32, bf16 = jnp.float32, jnp.bfloat16
    H = params["w_hh"].shape[1]          # w_hh: (4H, H)
    D_in = params["w_ih"].shape[1]       # w_ih: (4H, D_in)
    E = params["w_fc"].shape[0]          # w_fc: (E, H)
    Ep = _round_up(E, 128)               # lane-dense output store (never < 128 lanes)

    wih_p = params["w_ih"].T.astype(bf16)                                   # (D_in, 4H)
    whh_p = params["w_hh"].T.astype(bf16)                                   # (H, 4H)
    b_p = (params["b_ih"] + params["b_hh"]).astype(f32).reshape(1, 4 * H)   # (1, 4H)
    wfc_p = jnp.zeros((H, Ep), bf16).at[:, :E].set(params["w_fc"].T.astype(bf16))
    bfc_p = jnp.zeros((1, Ep), f32).at[0, :E].set(params["b_fc"].astype(f32))

    return dict(hidden_size=H, input_size=D_in, num_events=E,
                wih=wih_p, whh=whh_p, b=b_p, wfc=wfc_p, bfc=bfc_p)


def simple_lstm_forward(x, prep, output_size):
    """Pallas forward.  x: (B, input_size) -> (B, T=output_size, num_events)."""
    B, D_in = x.shape
    assert D_in == prep["input_size"]
    H, E = prep["hidden_size"], prep["num_events"]
    T = output_size
    Bp = _round_up(B, 8)                 # sublane multiple
    Ep = prep["wfc"].shape[1]

    # Only per-call data prep: sublane-pad the batch (padded rows are sliced away below).
    x_p = jnp.zeros((Bp, D_in), jnp.float32).at[:B, :].set(x.astype(jnp.float32))

    vmem = pl.BlockSpec(memory_space=pltpu.MemorySpace.VMEM)
    kernel = _make_kernel(H, T, Bp)

    # NOTE(v7x/v6e): at realistic batch sizes, switch to grid=(Bp // block_B,) with
    # dimension_semantics=("parallel",) so v7x's two TensorCores split the batch; give
    # the weight inputs constant index_maps (lambda i: (0, 0)) so they stay VMEM-resident
    # instead of being re-DMA'd per block; pick block_B as a multiple of 256 (v6e/v7x
    # MXU) or 128 (v5e); and re-derive the (T*block_B, H) scratch + double-buffered
    # x/out footprint against v7x's 64 MiB VMEM, setting vmem_limit_bytes explicitly
    # via pltpu.CompilerParams if raised.  At this toy size a grid only adds per-step
    # overhead, so the kernel runs ungridded.
    out_pad = pl.pallas_call(
        kernel,
        out_shape=jax.ShapeDtypeStruct((T * Bp, Ep), jnp.float32),
        in_specs=[vmem] * 6,
        out_specs=vmem,
        scratch_shapes=[pltpu.VMEM((T * Bp, H), jnp.float32)],
    )(x_p, prep["wih"], prep["whh"], prep["b"], prep["wfc"], prep["bfc"])

    out = out_pad.reshape(T, Bp, Ep)[:, :B, :E]              # (T, B, E)
    return jnp.transpose(out, (1, 0, 2))                     # (B, T, E), batch_first


def reference_forward(x, params, output_size):
    """Pure-JAX f32 reference matching PyTorch nn.LSTM + fc + sigmoid (eval mode)."""
    B, _ = x.shape
    H = params["w_hh"].shape[1]
    wih, whh = params["w_ih"], params["w_hh"]
    b = params["b_ih"] + params["b_hh"]
    h = jnp.zeros((B, H), jnp.float32)
    c = jnp.zeros((B, H), jnp.float32)
    outs = []
    for _ in range(output_size):
        gates = x @ wih.T + h @ whh.T + b
        i_g = jax.nn.sigmoid(gates[:, 0 * H:1 * H])
        f_g = jax.nn.sigmoid(gates[:, 1 * H:2 * H])
        g_g = jnp.tanh(gates[:, 2 * H:3 * H])
        o_g = jax.nn.sigmoid(gates[:, 3 * H:4 * H])
        c = f_g * c + i_g * g_g
        h = o_g * jnp.tanh(c)
        outs.append(jax.nn.sigmoid(h @ params["w_fc"].T + params["b_fc"]))
    return jnp.stack(outs, axis=1)   # (B, T, E)


if __name__ == "__main__":
    # Small shapes consistent with the module's forward.
    B = 2            # batch
    D_IN = 16        # input_size
    H = 32           # hidden_size
    T = 8            # output_size (sequence length after repeat)
    E = 4            # num_events

    key = jax.random.PRNGKey(0)
    keys = jax.random.split(key, 7)
    scale = 1.0 / jnp.sqrt(H)

    x = jax.random.normal(keys[0], (B, D_IN), jnp.float32)
    params = {
        "w_ih": jax.random.uniform(keys[1], (4 * H, D_IN), jnp.float32, -scale, scale),
        "w_hh": jax.random.uniform(keys[2], (4 * H, H), jnp.float32, -scale, scale),
        "b_ih": jax.random.uniform(keys[3], (4 * H,), jnp.float32, -scale, scale),
        "b_hh": jax.random.uniform(keys[4], (4 * H,), jnp.float32, -scale, scale),
        "w_fc": jax.random.uniform(keys[5], (E, H), jnp.float32, -scale, scale),
        "b_fc": jax.random.uniform(keys[6], (E,), jnp.float32, -scale, scale),
    }

    prep = prepare_params(params)        # one-time packing, off the per-call path

    out = jax.block_until_ready(simple_lstm_forward(x, prep, T))
    ref = jax.block_until_ready(reference_forward(x, params, T))

    assert out.shape == (B, T, E), out.shape
    # Tolerance loosened vs the f32 reference because matmul operands are bf16
    # (h/c recurrence and accumulation stay f32); observed error is ~1e-3.
    assert jnp.allclose(out, ref, atol=2e-2, rtol=2e-2), "mismatch vs JAX reference"
    print("KERNEL_OK")
</pallas_src>

<mosaic_0001>
module attributes {stable_mosaic.version = 11 : i64} {
  func.func @kernel(%arg0: memref<8x16xf32, #tpu.memory_space<vmem>>, %arg1: memref<16x128xbf16, #tpu.memory_space<vmem>>, %arg2: memref<32x128xbf16, #tpu.memory_space<vmem>>, %arg3: memref<1x128xf32, #tpu.memory_space<vmem>>, %arg4: memref<32x128xbf16, #tpu.memory_space<vmem>>, %arg5: memref<1x128xf32, #tpu.memory_space<vmem>>, %arg6: memref<64x128xf32, #tpu.memory_space<vmem>>, %arg7: memref<64x32xf32, #tpu.memory_space<vmem>>) attributes {dimension_semantics = [], scalar_prefetch = 0 : i64, scratch_operands = 1 : i64, tpu.core_type = #tpu.core_type<tc>} {
    %c0 = arith.constant 0 : index
    %c0_0 = arith.constant 0 : index
    %0 = vector.load %arg2[%c0, %c0_0] : memref<32x128xbf16, #tpu.memory_space<vmem>>, vector<32x128xbf16>
    %c0_1 = arith.constant 0 : index
    %c0_2 = arith.constant 0 : index
    %1 = vector.load %arg3[%c0_1, %c0_2] : memref<1x128xf32, #tpu.memory_space<vmem>>, vector<1x128xf32>
    %c0_3 = arith.constant 0 : index
    %c0_4 = arith.constant 0 : index
    %2 = vector.load %arg0[%c0_3, %c0_4] : memref<8x16xf32, #tpu.memory_space<vmem>>, vector<8x16xf32>
    %3 = arith.truncf %2 : vector<8x16xf32> to vector<8x16xbf16>
    %c0_5 = arith.constant 0 : index
    %c0_6 = arith.constant 0 : index
    %4 = vector.load %arg1[%c0_5, %c0_6] : memref<16x128xbf16, #tpu.memory_space<vmem>>, vector<16x128xbf16>
    %cst = arith.constant dense<0.000000e+00> : vector<8x128xf32>
    %5 = tpu.matmul %3, %4, %cst {dimension_numbers = #tpu.dot_dimension_numbers<[1], [0], [0], [1], [0, 0, 1, 1], [], []>} : vector<8x16xbf16>, vector<16x128xbf16>, vector<8x128xf32> -> vector<8x128xf32>
    %6 = vector.broadcast %1 : vector<1x128xf32> to vector<8x128xf32>
    %7 = arith.addf %5, %6 : vector<8x128xf32>
    %cst_7 = arith.constant 0.000000e+00 : f32
    %8 = vector.broadcast %cst_7 : f32 to vector<8x32xf32>
    %cst_8 = arith.constant 0.000000e+00 : f32
    %9 = vector.broadcast %cst_8 : f32 to vector<8x32xf32>
    %c0_i32 = arith.constant 0 : i32
    %10 = arith.truncf %8 : vector<8x32xf32> to vector<8x32xbf16>
    %cst_9 = arith.constant dense<0.000000e+00> : vector<8x128xf32>
    %11 = tpu.matmul %10, %0, %cst_9 {dimension_numbers = #tpu.dot_dimension_numbers<[1], [0], [0], [1], [0, 0, 1, 1], [], []>} : vector<8x32xbf16>, vector<32x128xbf16>, vector<8x128xf32> -> vector<8x128xf32>
    %12 = arith.addf %7, %11 : vector<8x128xf32>
    %13 = arith.negf %12 : vector<8x128xf32>
    %14 = math.exp %13 : vector<8x128xf32>
    %cst_10 = arith.constant 1.000000e+00 : f32
    %15 = vector.broadcast %cst_10 : f32 to vector<8x128xf32>
    %16 = arith.addf %15, %14 : vector<8x128xf32>
    %17 = arith.divf %15, %16 : vector<8x128xf32>
    %18 = math.tanh %12 : vector<8x128xf32>
    %19 = vector.extract_strided_slice %17 {offsets = [0, 0], sizes = [8, 32], strides = [1, 1]} : vector<8x128xf32> to vector<8x32xf32>
    %20 = vector.extract_strided_slice %17 {offsets = [0, 32], sizes = [8, 32], strides = [1, 1]} : vector<8x128xf32> to vector<8x32xf32>
    %21 = vector.extract_strided_slice %18 {offsets = [0, 64], sizes = [8, 32], strides = [1, 1]} : vector<8x128xf32> to vector<8x32xf32>
    %22 = vector.extract_strided_slice %17 {offsets = [0, 96], sizes = [8, 32], strides = [1, 1]} : vector<8x128xf32> to vector<8x32xf32>
    %23 = arith.mulf %20, %9 : vector<8x32xf32>
    %24 = arith.mulf %19, %21 : vector<8x32xf32>
    %25 = arith.addf %23, %24 : vector<8x32xf32>
    %26 = math.tanh %25 : vector<8x32xf32>
    %27 = arith.mulf %22, %26 : vector<8x32xf32>
    %c8_i32 = arith.constant 8 : i32
    %28 = arith.muli %c0_i32, %c8_i32 : i32
    %29 = tpu.assume_multiple %28, 8 : i32
    %30 = arith.index_cast %29 : i32 to index
    %c0_11 = arith.constant 0 : index
    %31 = vector.load %arg7[%30, %c0_11] : memref<64x32xf32, #tpu.memory_space<vmem>>, vector<8x32xf32>
    tpu.vector_store %arg7[%30, %c0_11], %27 {strides = array<i32>} : memref<64x32xf32, #tpu.memory_space<vmem>>, vector<8x32xf32>,
    %c1_i32 = arith.constant 1 : i32
    %32 = arith.truncf %27 : vector<8x32xf32> to vector<8x32xbf16>
    %cst_12 = arith.constant dense<0.000000e+00> : vector<8x128xf32>
    %33 = tpu.matmul %32, %0, %cst_12 {dimension_numbers = #tpu.dot_dimension_numbers<[1], [0], [0], [1], [0, 0, 1, 1], [], []>} : vector<8x32xbf16>, vector<32x128xbf16>, vector<8x128xf32> -> vector<8x128xf32>
    %34 = arith.addf %7, %33 : vector<8x128xf32>
    %35 = arith.negf %34 : vector<8x128xf32>
    %36 = math.exp %35 : vector<8x128xf32>
    %cst_13 = arith.constant 1.000000e+00 : f32
    %37 = vector.broadcast %cst_13 : f32 to vector<8x128xf32>
    %38 = arith.addf %37, %36 : vector<8x128xf32>
    %39 = arith.divf %37, %38 : vector<8x128xf32>
    %40 = math.tanh %34 : vector<8x128xf32>
    %41 = vector.extract_strided_slice %39 {offsets = [0, 0], sizes = [8, 32], strides = [1, 1]} : vector<8x128xf32> to vector<8x32xf32>
    %42 = vector.extract_strided_slice %39 {offsets = [0, 32], sizes = [8, 32], strides = [1, 1]} : vector<8x128xf32> to vector<8x32xf32>
    %43 = vector.extract_strided_slice %40 {offsets = [0, 64], sizes = [8, 32], strides = [1, 1]} : vector<8x128xf32> to vector<8x32xf32>
    %44 = vector.extract_strided_slice %39 {offsets = [0, 96], sizes = [8, 32], strides = [1, 1]} : vector<8x128xf32> to vector<8x32xf32>
    %45 = arith.mulf %42, %25 : vector<8x32xf32>
    %46 = arith.mulf %41, %43 : vector<8x32xf32>
    %47 = arith.addf %45, %46 : vector<8x32xf32>
    %48 = math.tanh %47 : vector<8x32xf32>
    %49 = arith.mulf %44, %48 : vector<8x32xf32>
    %c8_i32_14 = arith.constant 8 : i32
    %50 = arith.muli %c1_i32, %c8_i32_14 : i32
    %51 = tpu.assume_multiple %50, 8 : i32
    %52 = arith.index_cast %51 : i32 to index
    %c0_15 = arith.constant 0 : index
    %53 = vector.load %arg7[%52, %c0_15] : memref<64x32xf32, #tpu.memory_space<vmem>>, vector<8x32xf32>
    tpu.vector_store %arg7[%52, %c0_15], %49 {strides = array<i32>} : memref<64x32xf32, #tpu.memory_space<vmem>>, vector<8x32xf32>,
    %c2_i32 = arith.constant 2 : i32
    %54 = arith.truncf %49 : vector<8x32xf32> to vector<8x32xbf16>
    %cst_16 = arith.constant dense<0.000000e+00> : vector<8x128xf32>
    %55 = tpu.matmul %54, %0, %cst_16 {dimension_numbers = #tpu.dot_dimension_numbers<[1], [0], [0], [1], [0, 0, 1, 1], [], []>} : vector<8x32xbf16>, vector<32x128xbf16>, vector<8x128xf32> -> vector<8x128xf32>
    %56 = arith.addf %7, %55 : vector<8x128xf32>
    %57 = arith.negf %56 : vector<8x128xf32>
    %58 = math.exp %57 : vector<8x128xf32>
    %cst_17 = arith.constant 1.000000e+00 : f32
    %59 = vector.broadcast %cst_17 : f32 to vector<8x128xf32>
    %60 = arith.addf %59, %58 : vector<8x128xf32>
    %61 = arith.divf %59, %60 : vector<8x128xf32>
    %62 = math.tanh %56 : vector<8x128xf32>
    %63 = vector.extract_strided_slice %61 {offsets = [0, 0], sizes = [8, 32], strides = [1, 1]} : vector<8x128xf32> to vector<8x32xf32>
    %64 = vector.extract_strided_slice %61 {offsets = [0, 32], sizes = [8, 32], strides = [1, 1]} : vector<8x128xf32> to vector<8x32xf32>
    %65 = vector.extract_strided_slice %62 {offsets = [0, 64], sizes = [8, 32], strides = [1, 1]} : vector<8x128xf32> to vector<8x32xf32>
    %66 = vector.extract_strided_slice %61 {offsets = [0, 96], sizes = [8, 32], strides = [1, 1]} : vector<8x128xf32> to vector<8x32xf32>
    %67 = arith.mulf %64, %47 : vector<8x32xf32>
    %68 = arith.mulf %63, %65 : vector<8x32xf32>
    %69 = arith.addf %67, %68 : vector<8x32xf32>
    %70 = math.tanh %69 : vector<8x32xf32>
    %71 = arith.mulf %66, %70 : vector<8x32xf32>
    %c8_i32_18 = arith.constant 8 : i32
    %72 = arith.muli %c2_i32, %c8_i32_18 : i32
    %73 = tpu.assume_multiple %72, 8 : i32
    %74 = arith.index_cast %73 : i32 to index
    %c0_19 = arith.constant 0 : index
    %75 = vector.load %arg7[%74, %c0_19] : memref<64x32xf32, #tpu.memory_space<vmem>>, vector<8x32xf32>
    tpu.vector_store %arg7[%74, %c0_19], %71 {strides = array<i32>} : memref<64x32xf32, #tpu.memory_space<vmem>>, vector<8x32xf32>,
    %c3_i32 = arith.constant 3 : i32
    %76 = arith.truncf %71 : vector<8x32xf32> to vector<8x32xbf16>
    %cst_20 = arith.constant dense<0.000000e+00> : vector<8x128xf32>
    %77 = tpu.matmul %76, %0, %cst_20 {dimension_numbers = #tpu.dot_dimension_numbers<[1], [0], [0], [1], [0, 0, 1, 1], [], []>} : vector<8x32xbf16>, vector<32x128xbf16>, vector<8x128xf32> -> vector<8x128xf32>
    %78 = arith.addf %7, %77 : vector<8x128xf32>
    %79 = arith.negf %78 : vector<8x128xf32>
    %80 = math.exp %79 : vector<8x128xf32>
    %cst_21 = arith.constant 1.000000e+00 : f32
    %81 = vector.broadcast %cst_21 : f32 to vector<8x128xf32>
    %82 = arith.addf %81, %80 : vector<8x128xf32>
    %83 = arith.divf %81, %82 : vector<8x128xf32>
    %84 = math.tanh %78 : vector<8x128xf32>
    %85 = vector.extract_strided_slice %83 {offsets = [0, 0], sizes = [8, 32], strides = [1, 1]} : vector<8x128xf32> to vector<8x32xf32>
    %86 = vector.extract_strided_slice %83 {offsets = [0, 32], sizes = [8, 32], strides = [1, 1]} : vector<8x128xf32> to vector<8x32xf32>
    %87 = vector.extract_strided_slice %84 {offsets = [0, 64], sizes = [8, 32], strides = [1, 1]} : vector<8x128xf32> to vector<8x32xf32>
    %88 = vector.extract_strided_slice %83 {offsets = [0, 96], sizes = [8, 32], strides = [1, 1]} : vector<8x128xf32> to vector<8x32xf32>
    %89 = arith.mulf %86, %69 : vector<8x32xf32>
    %90 = arith.mulf %85, %87 : vector<8x32xf32>
    %91 = arith.addf %89, %90 : vector<8x32xf32>
    %92 = math.tanh %91 : vector<8x32xf32>
    %93 = arith.mulf %88, %92 : vector<8x32xf32>
    %c8_i32_22 = arith.constant 8 : i32
    %94 = arith.muli %c3_i32, %c8_i32_22 : i32
    %95 = tpu.assume_multiple %94, 8 : i32
    %96 = arith.index_cast %95 : i32 to index
    %c0_23 = arith.constant 0 : index
    %97 = vector.load %arg7[%96, %c0_23] : memref<64x32xf32, #tpu.memory_space<vmem>>, vector<8x32xf32>
    tpu.vector_store %arg7[%96, %c0_23], %93 {strides = array<i32>} : memref<64x32xf32, #tpu.memory_space<vmem>>, vector<8x32xf32>,
    %c4_i32 = arith.constant 4 : i32
    %98 = arith.truncf %93 : vector<8x32xf32> to vector<8x32xbf16>
    %cst_24 = arith.constant dense<0.000000e+00> : vector<8x128xf32>
    %99 = tpu.matmul %98, %0, %cst_24 {dimension_numbers = #tpu.dot_dimension_numbers<[1], [0], [0], [1], [0, 0, 1, 1], [], []>} : vector<8x32xbf16>, vector<32x128xbf16>, vector<8x128xf32> -> vector<8x128xf32>
    %100 = arith.addf %7, %99 : vector<8x128xf32>
    %101 = arith.negf %100 : vector<8x128xf32>
    %102 = math.exp %101 : vector<8x128xf32>
    %cst_25 = arith.constant 1.000000e+00 : f32
    %103 = vector.broadcast %cst_25 : f32 to vector<8x128xf32>
    %104 = arith.addf %103, %102 : vector<8x128xf32>
    %105 = arith.divf %103, %104 : vector<8x128xf32>
    %106 = math.tanh %100 : vector<8x128xf32>
    %107 = vector.extract_strided_slice %105 {offsets = [0, 0], sizes = [8, 32], strides = [1, 1]} : vector<8x128xf32> to vector<8x32xf32>
    %108 = vector.extract_strided_slice %105 {offsets = [0, 32], sizes = [8, 32], strides = [1, 1]} : vector<8x128xf32> to vector<8x32xf32>
    %109 = vector.extract_strided_slice %106 {offsets = [0, 64], sizes = [8, 32], strides = [1, 1]} : vector<8x128xf32> to vector<8x32xf32>
    %110 = vector.extract_strided_slice %105 {offsets = [0, 96], sizes = [8, 32], strides = [1, 1]} : vector<8x128xf32> to vector<8x32xf32>
    %111 = arith.mulf %108, %91 : vector<8x32xf32>
    %112 = arith.mulf %107, %109 : vector<8x32xf32>
    %113 = arith.addf %111, %112 : vector<8x32xf32>
    %114 = math.tanh %113 : vector<8x32xf32>
    %115 = arith.mulf %110, %114 : vector<8x32xf32>
    %c8_i32_26 = arith.constant 8 : i32
    %116 = arith.muli %c4_i32, %c8_i32_26 : i32
    %117 = tpu.assume_multiple %116, 8 : i32
    %118 = arith.index_cast %117 : i32 to index
    %c0_27 = arith.constant 0 : index
    %119 = vector.load %arg7[%118, %c0_27] : memref<64x32xf32, #tpu.memory_space<vmem>>, vector<8x32xf32>
    tpu.vector_store %arg7[%118, %c0_27], %115 {strides = array<i32>} : memref<64x32xf32, #tpu.memory_space<vmem>>, vector<8x32xf32>,
    %c5_i32 = arith.constant 5 : i32
    %120 = arith.truncf %115 : vector<8x32xf32> to vector<8x32xbf16>
    %cst_28 = arith.constant dense<0.000000e+00> : vector<8x128xf32>
    %121 = tpu.matmul %120, %0, %cst_28 {dimension_numbers = #tpu.dot_dimension_numbers<[1], [0], [0], [1], [0, 0, 1, 1], [], []>} : vector<8x32xbf16>, vector<32x128xbf16>, vector<8x128xf32> -> vector<8x128xf32>
    %122 = arith.addf %7, %121 : vector<8x128xf32>
    %123 = arith.negf %122 : vector<8x128xf32>
    %124 = math.exp %123 : vector<8x128xf32>
    %cst_29 = arith.constant 1.000000e+00 : f32
    %125 = vector.broadcast %cst_29 : f32 to vector<8x128xf32>
    %126 = arith.addf %125, %124 : vector<8x128xf32>
    %127 = arith.divf %125, %126 : vector<8x128xf32>
    %128 = math.tanh %122 : vector<8x128xf32>
    %129 = vector.extract_strided_slice %127 {offsets = [0, 0], sizes = [8, 32], strides = [1, 1]} : vector<8x128xf32> to vector<8x32xf32>
    %130 = vector.extract_strided_slice %127 {offsets = [0, 32], sizes = [8, 32], strides = [1, 1]} : vector<8x128xf32> to vector<8x32xf32>
    %131 = vector.extract_strided_slice %128 {offsets = [0, 64], sizes = [8, 32], strides = [1, 1]} : vector<8x128xf32> to vector<8x32xf32>
    %132 = vector.extract_strided_slice %127 {offsets = [0, 96], sizes = [8, 32], strides = [1, 1]} : vector<8x128xf32> to vector<8x32xf32>
    %133 = arith.mulf %130, %113 : vector<8x32xf32>
    %134 = arith.mulf %129, %131 : vector<8x32xf32>
    %135 = arith.addf %133, %134 : vector<8x32xf32>
    %136 = math.tanh %135 : vector<8x32xf32>
    %137 = arith.mulf %132, %136 : vector<8x32xf32>
    %c8_i32_30 = arith.constant 8 : i32
    %138 = arith.muli %c5_i32, %c8_i32_30 : i32
    %139 = tpu.assume_multiple %138, 8 : i32
    %140 = arith.index_cast %139 : i32 to index
    %c0_31 = arith.constant 0 : index
    %141 = vector.load %arg7[%140, %c0_31] : memref<64x32xf32, #tpu.memory_space<vmem>>, vector<8x32xf32>
    tpu.vector_store %arg7[%140, %c0_31], %137 {strides = array<i32>} : memref<64x32xf32, #tpu.memory_space<vmem>>, vector<8x32xf32>,
    %c6_i32 = arith.constant 6 : i32
    %142 = arith.truncf %137 : vector<8x32xf32> to vector<8x32xbf16>
    %cst_32 = arith.constant dense<0.000000e+00> : vector<8x128xf32>
    %143 = tpu.matmul %142, %0, %cst_32 {dimension_numbers = #tpu.dot_dimension_numbers<[1], [0], [0], [1], [0, 0, 1, 1], [], []>} : vector<8x32xbf16>, vector<32x128xbf16>, vector<8x128xf32> -> vector<8x128xf32>
    %144 = arith.addf %7, %143 : vector<8x128xf32>
    %145 = arith.negf %144 : vector<8x128xf32>
    %146 = math.exp %145 : vector<8x128xf32>
    %cst_33 = arith.constant 1.000000e+00 : f32
    %147 = vector.broadcast %cst_33 : f32 to vector<8x128xf32>
    %148 = arith.addf %147, %146 : vector<8x128xf32>
    %149 = arith.divf %147, %148 : vector<8x128xf32>
    %150 = math.tanh %144 : vector<8x128xf32>
    %151 = vector.extract_strided_slice %149 {offsets = [0, 0], sizes = [8, 32], strides = [1, 1]} : vector<8x128xf32> to vector<8x32xf32>
    %152 = vector.extract_strided_slice %149 {offsets = [0, 32], sizes = [8, 32], strides = [1, 1]} : vector<8x128xf32> to vector<8x32xf32>
    %153 = vector.extract_strided_slice %150 {offsets = [0, 64], sizes = [8, 32], strides = [1, 1]} : vector<8x128xf32> to vector<8x32xf32>
    %154 = vector.extract_strided_slice %149 {offsets = [0, 96], sizes = [8, 32], strides = [1, 1]} : vector<8x128xf32> to vector<8x32xf32>
    %155 = arith.mulf %152, %135 : vector<8x32xf32>
    %156 = arith.mulf %151, %153 : vector<8x32xf32>
    %157 = arith.addf %155, %156 : vector<8x32xf32>
    %158 = math.tanh %157 : vector<8x32xf32>
    %159 = arith.mulf %154, %158 : vector<8x32xf32>
    %c8_i32_34 = arith.constant 8 : i32
    %160 = arith.muli %c6_i32, %c8_i32_34 : i32
    %161 = tpu.assume_multiple %160, 8 : i32
    %162 = arith.index_cast %161 : i32 to index
    %c0_35 = arith.constant 0 : index
    %163 = vector.load %arg7[%162, %c0_35] : memref<64x32xf32, #tpu.memory_space<vmem>>, vector<8x32xf32>
    tpu.vector_store %arg7[%162, %c0_35], %159 {strides = array<i32>} : memref<64x32xf32, #tpu.memory_space<vmem>>, vector<8x32xf32>,
    %c7_i32 = arith.constant 7 : i32
    %164 = arith.truncf %159 : vector<8x32xf32> to vector<8x32xbf16>
    %cst_36 = arith.constant dense<0.000000e+00> : vector<8x128xf32>
    %165 = tpu.matmul %164, %0, %cst_36 {dimension_numbers = #tpu.dot_dimension_numbers<[1], [0], [0], [1], [0, 0, 1, 1], [], []>} : vector<8x32xbf16>, vector<32x128xbf16>, vector<8x128xf32> -> vector<8x128xf32>
    %166 = arith.addf %7, %165 : vector<8x128xf32>
    %167 = arith.negf %166 : vector<8x128xf32>
    %168 = math.exp %167 : vector<8x128xf32>
    %cst_37 = arith.constant 1.000000e+00 : f32
    %169 = vector.broadcast %cst_37 : f32 to vector<8x128xf32>
    %170 = arith.addf %169, %168 : vector<8x128xf32>
    %171 = arith.divf %169, %170 : vector<8x128xf32>
    %172 = math.tanh %166 : vector<8x128xf32>
    %173 = vector.extract_strided_slice %171 {offsets = [0, 0], sizes = [8, 32], strides = [1, 1]} : vector<8x128xf32> to vector<8x32xf32>
    %174 = vector.extract_strided_slice %171 {offsets = [0, 32], sizes = [8, 32], strides = [1, 1]} : vector<8x128xf32> to vector<8x32xf32>
    %175 = vector.extract_strided_slice %172 {offsets = [0, 64], sizes = [8, 32], strides = [1, 1]} : vector<8x128xf32> to vector<8x32xf32>
    %176 = vector.extract_strided_slice %171 {offsets = [0, 96], sizes = [8, 32], strides = [1, 1]} : vector<8x128xf32> to vector<8x32xf32>
    %177 = arith.mulf %174, %157 : vector<8x32xf32>
    %178 = arith.mulf %173, %175 : vector<8x32xf32>
    %179 = arith.addf %177, %178 : vector<8x32xf32>
    %180 = math.tanh %179 : vector<8x32xf32>
    %181 = arith.mulf %176, %180 : vector<8x32xf32>
    %c8_i32_38 = arith.constant 8 : i32
    %182 = arith.muli %c7_i32, %c8_i32_38 : i32
    %183 = tpu.assume_multiple %182, 8 : i32
    %184 = arith.index_cast %183 : i32 to index
    %c0_39 = arith.constant 0 : index
    %185 = vector.load %arg7[%184, %c0_39] : memref<64x32xf32, #tpu.memory_space<vmem>>, vector<8x32xf32>
    tpu.vector_store %arg7[%184, %c0_39], %181 {strides = array<i32>} : memref<64x32xf32, #tpu.memory_space<vmem>>, vector<8x32xf32>,
    %c8_i32_40 = arith.constant 8 : i32
    %c0_41 = arith.constant 0 : index
    %c0_42 = arith.constant 0 : index
    %186 = vector.load %arg7[%c0_41, %c0_42] : memref<64x32xf32, #tpu.memory_space<vmem>>, vector<64x32xf32>
    %187 = arith.truncf %186 : vector<64x32xf32> to vector<64x32xbf16>
    %c0_43 = arith.constant 0 : index
    %c0_44 = arith.constant 0 : index
    %188 = vector.load %arg4[%c0_43, %c0_44] : memref<32x128xbf16, #tpu.memory_space<vmem>>, vector<32x128xbf16>
    %cst_45 = arith.constant dense<0.000000e+00> : vector<64x128xf32>
    %189 = tpu.matmul %187, %188, %cst_45 {dimension_numbers = #tpu.dot_dimension_numbers<[1], [0], [0], [1], [0, 0, 1, 1], [], []>} : vector<64x32xbf16>, vector<32x128xbf16>, vector<64x128xf32> -> vector<64x128xf32>
    %c0_46 = arith.constant 0 : index
    %c0_47 = arith.constant 0 : index
    %190 = vector.load %arg5[%c0_46, %c0_47] : memref<1x128xf32, #tpu.memory_space<vmem>>, vector<1x128xf32>
    %191 = vector.broadcast %190 : vector<1x128xf32> to vector<64x128xf32>
    %192 = arith.addf %189, %191 : vector<64x128xf32>
    %193 = arith.negf %192 : vector<64x128xf32>
    %194 = math.exp %193 : vector<64x128xf32>
    %cst_48 = arith.constant 1.000000e+00 : f32
    %195 = vector.broadcast %cst_48 : f32 to vector<64x128xf32>
    %196 = arith.addf %195, %194 : vector<64x128xf32>
    %197 = arith.divf %195, %196 : vector<64x128xf32>
    %c0_49 = arith.constant 0 : index
    %c0_50 = arith.constant 0 : index
    %198 = vector.load %arg6[%c0_49, %c0_50] : memref<64x128xf32, #tpu.memory_space<vmem>>, vector<64x128xf32>
    tpu.vector_store %arg6[%c0_49, %c0_50], %197 {strides = array<i32>} : memref<64x128xf32, #tpu.memory_space<vmem>>, vector<64x128xf32>,
    return
  }
}

</mosaic_0001>

<llo_original>
// kernel: tpu_custom_call.1
$region0: #{tpu_custom_call.1}
  #allocation0 [shape = 'u32[]', space=smem, size = 0x4, offset = 0x4, fixed_abs, tag = 'smem constant byte address 0x4 - core index']
  #allocation1 [shape = 'u32[144,128]{1,0:T(1,128)}', space=vmem, size = 0x12000, scoped, tag = 'internal scratch']
  #allocation2 [shape = 'f32[64,32]{1,0:T(8,128)}', space=vmem, size = 0x8000, scoped, tag = 'scratch operand']
  %s0 = inlined_call_operand.hbm [shape: f32[8,16], index: 0, kind: input, shape index: {}]
  %s1 = inlined_call_operand.hbm [shape: bf16[16,128], index: 1, kind: input, shape index: {}]
  %s2 = inlined_call_operand.hbm [shape: bf16[32,128], index: 2, kind: input, shape index: {}]
  %s3 = inlined_call_operand.vmem [shape: f32[1,128], index: 3, kind: input, shape index: {}]
  %s4 = inlined_call_operand.hbm [shape: bf16[32,128], index: 4, kind: input, shape index: {}]
  %s5 = inlined_call_operand.vmem [shape: f32[1,128], index: 5, kind: input, shape index: {}]
  %s6 = inlined_call_operand.hbm [shape: f32[64,128], index: 6, kind: output, shape index: {}]
  %s7 = sld [smem:[#allocation0]]
  $region50: #{tpu_custom_call.1} parent=0
    _
  %s9 = ssub.s32 1, %s7
  %s10 = scalar_select 0, %s9, %s7
  $region1: #{tpu_custom_call.1} parent=0
    #allocation3 [shape = 'u8[4096]{0}', space=vmem, size = 0x1000, scoped, tag = 'input window, operand 0, single buffered']
    #allocation4 [shape = 's32[1]{0}', space=sflag, size = 0x4, scoped, tag = 'scoped memory for tpu_custom_call.1']
    #allocation5 [shape = 's32[1]{0}', space=sflag, size = 0x4, scoped, tag = 'scoped memory for tpu_custom_call.1']
    #allocation6 [shape = 'u8[4096]{0}', space=vmem, size = 0x1000, scoped, tag = 'input window, operand 1, single buffered']
    #allocation7 [shape = 's32[1]{0}', space=sflag, size = 0x4, scoped, tag = 'scoped memory for tpu_custom_call.1']
    #allocation8 [shape = 'u8[8192]{0}', space=vmem, size = 0x2000, scoped, tag = 'input window, operand 2, single buffered']
    #allocation9 [shape = 'u8[8192]{0}', space=vmem, size = 0x2000, scoped, tag = 'input window, operand 4, single buffered']
    #allocation10 [shape = 's32[1]{0}', space=sflag, size = 0x4, scoped, tag = 'scoped memory for tpu_custom_call.1']
    #allocation11 [shape = 'u8[32768]{0}', space=vmem, size = 0x8000, scoped, tag = 'output window, operand 0, single buffered']
    %11 = vsyncpa [#allocation4], 0
    %12 = vsyncpa [#allocation7], 0
    %13 = vsyncpa [#allocation10], 0
    %14 = vsyncpa [#allocation5], 0
    // Predicated region
    $region2: #{tpu_custom_call.1} parent=1 // pred_check
      _
    $region3: #{tpu_custom_call.1} parent=1 // pred_check_branch
      %16 = sbr.rel (0) target = $region5
    $region4: #{tpu_custom_call.1} parent=1 // pred_region
      %s18 = ssub.s32 128, 128
      %19 = vsyncadd [#allocation4], %s18
      %s21 = sshll.u32 [#allocation3], 4
      %s22 = int_to_ptr.vmem [resolvable:$true] %s21
      %24 = dma.hbm_to_vmem [thread:$0]  %s0, 128, %s22, [#allocation4]
    $region5: #{tpu_custom_call.1} parent=1 // pred_fallthru
      _
    // Predicated region
    $region6: #{tpu_custom_call.1} parent=1 // pred_check
      _
    $region7: #{tpu_custom_call.1} parent=1 // pred_check_branch
      %26 = sbr.rel (0) target = $region9
    $region8: #{tpu_custom_call.1} parent=1 // pred_region
      %s28 = ssub.s32 128, 128
      %29 = vsyncadd [#allocation7], %s28
      %s30 = sshll.u32 [#allocation6], 4
      %s31 = int_to_ptr.vmem [resolvable:$true] %s30
      %36 = dma.hbm_to_vmem [thread:$0]  %s1, 128, %s31, [#allocation7], 64, 64, 4
    $region9: #{tpu_custom_call.1} parent=1 // pred_fallthru
      _
    // Predicated region
    $region10: #{tpu_custom_call.1} parent=1 // pred_check
      _
    $region11: #{tpu_custom_call.1} parent=1 // pred_check_branch
      %38 = sbr.rel (0) target = $region13
    $region12: #{tpu_custom_call.1} parent=1 // pred_region
      %s40 = ssub.s32 256, 256
      %41 = vsyncadd [#allocation7], %s40
      %s42 = sshll.u32 [#allocation8], 4
      %s43 = int_to_ptr.vmem [resolvable:$true] %s42
      %48 = dma.hbm_to_vmem [thread:$0]  %s2, 256, %s43, [#allocation7], 64, 64, 4
    $region13: #{tpu_custom_call.1} parent=1 // pred_fallthru
      _
    // Predicated region
    $region14: #{tpu_custom_call.1} parent=1 // pred_check
      _
    $region15: #{tpu_custom_call.1} parent=1 // pred_check_branch
      %50 = sbr.rel (0) target = $region17
    $region16: #{tpu_custom_call.1} parent=1 // pred_region
      _
    $region17: #{tpu_custom_call.1} parent=1 // pred_fallthru
      _
    // Predicated region
    $region18: #{tpu_custom_call.1} parent=1 // pred_check
      _
    $region19: #{tpu_custom_call.1} parent=1 // pred_check_branch
      %52 = sbr.rel (0) target = $region21
    $region20: #{tpu_custom_call.1} parent=1 // pred_region
      %s54 = ssub.s32 256, 256
      %55 = vsyncadd [#allocation10], %s54
      %s56 = sshll.u32 [#allocation9], 4
      %s57 = int_to_ptr.vmem [resolvable:$true] %s56
      %62 = dma.hbm_to_vmem [thread:$0]  %s4, 256, %s57, [#allocation10], 64, 64, 4
    $region21: #{tpu_custom_call.1} parent=1 // pred_fallthru
      _
    // Predicated region
    $region22: #{tpu_custom_call.1} parent=1 // pred_check
      _
    $region23: #{tpu_custom_call.1} parent=1 // pred_check_branch
      %64 = sbr.rel (0) target = $region25
    $region24: #{tpu_custom_call.1} parent=1 // pred_region
      _
    $region25: #{tpu_custom_call.1} parent=1 // pred_fallthru
      _
    // Predicated region
    $region26: #{tpu_custom_call.1} parent=1 // pred_check
      _
    $region27: #{tpu_custom_call.1} parent=1 // pred_check_branch
      %66 = sbr.rel (0) target = $region29
    $region28: #{tpu_custom_call.1} parent=1 // pred_region
      %67 = dma.done [#allocation4], 128
    $region29: #{tpu_custom_call.1} parent=1 // pred_fallthru
      _
    // Predicated region
    $region30: #{tpu_custom_call.1} parent=1 // pred_check
      _
    $region31: #{tpu_custom_call.1} parent=1 // pred_check_branch
      %69 = sbr.rel (0) target = $region33
    $region32: #{tpu_custom_call.1} parent=1 // pred_region
      %70 = dma.done [#allocation7], 128
    $region33: #{tpu_custom_call.1} parent=1 // pred_fallthru
      _
    // Predicated region
    $region34: #{tpu_custom_call.1} parent=1 // pred_check
      _
    $region35: #{tpu_custom_call.1} parent=1 // pred_check_branch
      %72 = sbr.rel (0) target = $region37
    $region36: #{tpu_custom_call.1} parent=1 // pred_region
      %73 = dma.done [#allocation7], 256
    $region37: #{tpu_custom_call.1} parent=1 // pred_fallthru
      _
    // Predicated region
    $region38: #{tpu_custom_call.1} parent=1 // pred_check
      _
    $region39: #{tpu_custom_call.1} parent=1 // pred_check_branch
      %75 = sbr.rel (0) target = $region41
    $region40: #{tpu_custom_call.1} parent=1 // pred_region
      %76 = dma.done [#allocation10], 256
    $region41: #{tpu_custom_call.1} parent=1 // pred_fallthru
      _
    %v78 = vld [vmem:[#allocation8] sm:$0xf]
    %v79 = vld [vmem:[#allocation8 + $0x4] sm:$0xf]
    %v80 = vld [vmem:[#allocation8 + $0x8] sm:$0xf]
    %v81 = vld [vmem:[#allocation8 + $0xc] sm:$0xf]
    %v82 = vld [vmem:[%s3] sm:$0x1]
    %v83 = vld [vmem:[#allocation3] sm:$0xff]
    %v84 = vpack.c.bf16 %v83, %v83
    %v85 = vld [vmem:[#allocation6] sm:$0xf]
    %v86 = vld [vmem:[#allocation6 + $0x4] sm:$0xf]
    %v88 = vlaneseq
    %v89 = vshrl.u32 %v88, 7
    %v90 = vsub.s32 0, %v89
    %v91 = vrot.slane %v82, %v90
    %v95 = vunpack.c.l.b16 %v85
    %v96 = vunpack.c.l.b16 %v86
    %v97 = vpack.c.b16 %v96, %v95
    %vm99 = vcmask 130048
    %v101 = vsel %vm99, %v84, 0
    %103 = vmatprep.subr.bf16.mxu0 0
    %104 = vmatpush1.bf16.msra.mxu0 %v97
    %105 = vmatprep.subr.bf16.mxu0 0
    %106 = vmatpush1.bf16.msra.mxu0 0
    %107 = vmatprep.subr.bf16.mxu0 0
    %108 = vmatpush1.bf16.msra.mxu0 0
    %109 = vmatprep.subr.bf16.mxu0 0
    %110 = vmatpush1.bf16.msra.mxu0 0
    %111 = vmatprep.subr.bf16.mxu0 0
    %112 = vmatpush1.bf16.msra.mxu0 0
    %113 = vmatprep.subr.bf16.mxu0 0
    %114 = vmatpush1.bf16.msra.mxu0 0
    %115 = vmatprep.subr.bf16.mxu0 0
    %116 = vmatpush1.bf16.msra.mxu0 0
    %117 = vmatprep.subr.bf16.mxu0 0
    %118 = vmatpush1.bf16.msra.mxu0 0
    %119 = vmatprep.subr.bf16.mxu0 0
    %120 = vmatpush1.bf16.msra.mxu0 0
    %121 = vmatprep.subr.bf16.mxu0 0
    %122 = vmatpush1.bf16.msra.mxu0 0
    %123 = vmatprep.subr.bf16.mxu0 0
    %124 = vmatpush1.bf16.msra.mxu0 0
    %125 = vmatprep.subr.bf16.mxu0 0
    %126 = vmatpush1.bf16.msra.mxu0 0
    %127 = vmatprep.subr.bf16.mxu0 0
    %128 = vmatpush1.bf16.msra.mxu0 0
    %129 = vmatprep.subr.bf16.mxu0 0
    %130 = vmatpush1.bf16.msra.mxu0 0
    %131 = vmatprep.subr.bf16.mxu0 0
    %132 = vmatpush1.bf16.msra.mxu0 0
    %133 = vmatprep.subr.bf16.mxu0 0
    %134 = vmatpush1.bf16.msra.mxu0 0
    %135 = vmatprep.mubr.bf16.mxu0 0
    %136 = vmatmul.mubr.bf16.gmra.mrb[0].mxu0 %v101
    %v137 = vpop.f32.mrb[0].mxu0
    %v138 = vadd.f32 %v91, %v137
    %v139 = vpop.f32.mrb[0].mxu0
    %v140 = vpop.f32.mrb[0].mxu0
    %v141 = vpop.f32.mrb[0].mxu0
    %142 = vdwg.mxu0
    %v147 = vunpack.c.l.b16 %v78
    %v148 = vunpack.c.l.b16 %v79
    %v149 = vunpack.c.l.b16 %v80
    %v150 = vunpack.c.l.b16 %v81
    %v151 = vpack.c.b16 %v148, %v147
    %v152 = vpack.c.b16 %v150, %v149
    %vm155 = vcmask 261120
    %v157 = vsel %vm155, 0, 0
    %159 = vmatprep.subr.bf16.mxu0 0
    %160 = vmatpush1.bf16.msra.mxu0 %v151
    %161 = vmatprep.subr.bf16.mxu0 0
    %162 = vmatpush1.bf16.msra.mxu0 %v152
    %163 = vmatprep.subr.bf16.mxu0 0
    %164 = vmatpush1.bf16.msra.mxu0 0
    %165 = vmatprep.subr.bf16.mxu0 0
    %166 = vmatpush1.bf16.msra.mxu0 0
    %167 = vmatprep.subr.bf16.mxu0 0
    %168 = vmatpush1.bf16.msra.mxu0 0
    %169 = vmatprep.subr.bf16.mxu0 0
    %170 = vmatpush1.bf16.msra.mxu0 0
    %171 = vmatprep.subr.bf16.mxu0 0
    %172 = vmatpush1.bf16.msra.mxu0 0
    %173 = vmatprep.subr.bf16.mxu0 0
    %174 = vmatpush1.bf16.msra.mxu0 0
    %175 = vmatprep.subr.bf16.mxu0 0
    %176 = vmatpush1.bf16.msra.mxu0 0
    %177 = vmatprep.subr.bf16.mxu0 0
    %178 = vmatpush1.bf16.msra.mxu0 0
    %179 = vmatprep.subr.bf16.mxu0 0
    %180 = vmatpush1.bf16.msra.mxu0 0
    %181 = vmatprep.subr.bf16.mxu0 0
    %182 = vmatpush1.bf16.msra.mxu0 0
    %183 = vmatprep.subr.bf16.mxu0 0
    %184 = vmatpush1.bf16.msra.mxu0 0
    %185 = vmatprep.subr.bf16.mxu0 0
    %186 = vmatpush1.bf16.msra.mxu0 0
    %187 = vmatprep.subr.bf16.mxu0 0
    %188 = vmatpush1.bf16.msra.mxu0 0
    %189 = vmatprep.subr.bf16.mxu0 0
    %190 = vmatpush1.bf16.msra.mxu0 0
    %191 = vmatprep.mubr.bf16.mxu0 0
    %192 = vmatmul.mubr.bf16.gmra.mrb[0].mxu0 %v157
    %v193 = vpop.f32.mrb[0].mxu0
    %v194 = vadd.f32 0.0, %v193
    %v195 = vpop.f32.mrb[0].mxu0
    %v196 = vpop.f32.mrb[0].mxu0
    %v197 = vpop.f32.mrb[0].mxu0
    %198 = vdwg.mxu0
    %v199 = vadd.f32 %v138, %v194
    %v200 = vxor.u32 %v199, 2147483648
    %v201 = vmul.f32 %v200, 1.442695
    %v202 = vpow.pop %v201
    %v203 = vadd.f32 %v202, 1.0
    %v204 = vrcp.pop %v203
    %v205 = vmul.f32 1.0, %v204
    %v206 = vtanh.pop %v199
    %v207 = vmul.f32 %v205, 0.0
    %209 = vrot.lane.b32.xlu0 %v206, 64
    %v210 = vpop.permute.xlu0 %209
    %v212 = vmul.f32 %v205, %v210
    %214 = vrot.lane.b32.xlu0 %v212, 32
    %v215 = vpop.permute.xlu0 %214
    %v217 = vadd.f32 %v207, %v215
    %v218 = vtanh.pop %v217
    %220 = vrot.lane.b32.xlu0 %v218, 64
    %v221 = vpop.permute.xlu0 %220
    %v223 = vmul.f32 %v205, %v221
    %225 = vrot.lane.b32.xlu0 %v223, 32
    %v226 = vpop.permute.xlu0 %225
    %228 = vst.msk [vmem:[#allocation2] sm:$0xff] %vm155, %v226
    %v229 = vpack.c.bf16 %v223, %v223
    %231 = vrot.lane.b32.xlu0 %v229, 32
    %v232 = vpop.permute.xlu0 %231
    %v234 = vsel %vm155, %v232, 0
    %236 = vmatprep.subr.bf16.mxu0 0
    %237 = vmatpush1.bf16.msra.mxu0 %v151
    %238 = vmatprep.subr.bf16.mxu0 0
    %239 = vmatpush1.bf16.msra.mxu0 %v152
    %240 = vmatprep.subr.bf16.mxu0 0
    %241 = vmatpush1.bf16.msra.mxu0 0
    %242 = vmatprep.subr.bf16.mxu0 0
    %243 = vmatpush1.bf16.msra.mxu0 0
    %244 = vmatprep.subr.bf16.mxu0 0
    %245 = vmatpush1.bf16.msra.mxu0 0
    %246 = vmatprep.subr.bf16.mxu0 0
    %247 = vmatpush1.bf16.msra.mxu0 0
    %248 = vmatprep.subr.bf16.mxu0 0
    %249 = vmatpush1.bf16.msra.mxu0 0
    %250 = vmatprep.subr.bf16.mxu0 0
    %251 = vmatpush1.bf16.msra.mxu0 0
    %252 = vmatprep.subr.bf16.mxu0 0
    %253 = vmatpush1.bf16.msra.mxu0 0
    %254 = vmatprep.subr.bf16.mxu0 0
    %255 = vmatpush1.bf16.msra.mxu0 0
    %256 = vmatprep.subr.bf16.mxu0 0
    %257 = vmatpush1.bf16.msra.mxu0 0
    %258 = vmatprep.subr.bf16.mxu0 0
    %259 = vmatpush1.bf16.msra.mxu0 0
    %260 = vmatprep.subr.bf16.mxu0 0
    %261 = vmatpush1.bf16.msra.mxu0 0
    %262 = vmatprep.subr.bf16.mxu0 0
    %263 = vmatpush1.bf16.msra.mxu0 0
    %264 = vmatprep.subr.bf16.mxu0 0
    %265 = vmatpush1.bf16.msra.mxu0 0
    %266 = vmatprep.subr.bf16.mxu0 0
    %267 = vmatpush1.bf16.msra.mxu0 0
    %268 = vmatprep.mubr.bf16.mxu0 0
    %269 = vmatmul.mubr.bf16.gmra.mrb[0].mxu0 %v234
    %v270 = vpop.f32.mrb[0].mxu0
    %v271 = vadd.f32 0.0, %v270
    %v272 = vpop.f32.mrb[0].mxu0
    %v273 = vpop.f32.mrb[0].mxu0
    %v274 = vpop.f32.mrb[0].mxu0
    %275 = vdwg.mxu0
    %v276 = vadd.f32 %v138, %v271
    %v277 = vxor.u32 %v276, 2147483648
    %v278 = vmul.f32 %v277, 1.442695
    %v279 = vpow.pop %v278
    %v280 = vadd.f32 %v279, 1.0
    %v281 = vrcp.pop %v280
    %v282 = vmul.f32 1.0, %v281
    %v283 = vtanh.pop %v276
    %v284 = vmul.f32 %v282, %v217
    %286 = vrot.lane.b32.xlu0 %v283, 64
    %v287 = vpop.permute.xlu0 %286
    %v289 = vmul.f32 %v282, %v287
    %291 = vrot.lane.b32.xlu0 %v289, 32
    %v292 = vpop.permute.xlu0 %291
    %v294 = vadd.f32 %v284, %v292
    %v295 = vtanh.pop %v294
    %297 = vrot.lane.b32.xlu0 %v295, 64
    %v298 = vpop.permute.xlu0 %297
    %v300 = vmul.f32 %v282, %v298
    %302 = vrot.lane.b32.xlu0 %v300, 32
    %v303 = vpop.permute.xlu0 %302
    %s305 = scalar_lea.vmem [#allocation2], 8
    %306 = vst.msk [vmem:[%s305] sm:$0xff] %vm155, %v303
    %v307 = vpack.c.bf16 %v300, %v300
    %309 = vrot.lane.b32.xlu0 %v307, 32
    %v310 = vpop.permute.xlu0 %309
    %v312 = vsel %vm155, %v310, 0
    %314 = vmatprep.subr.bf16.mxu0 0
    %315 = vmatpush1.bf16.msra.mxu0 %v151
    %316 = vmatprep.subr.bf16.mxu0 0
    %317 = vmatpush1.bf16.msra.mxu0 %v152
    %318 = vmatprep.subr.bf16.mxu0 0
    %319 = vmatpush1.bf16.msra.mxu0 0
    %320 = vmatprep.subr.bf16.mxu0 0
    %321 = vmatpush1.bf16.msra.mxu0 0
    %322 = vmatprep.subr.bf16.mxu0 0
    %323 = vmatpush1.bf16.msra.mxu0 0
    %324 = vmatprep.subr.bf16.mxu0 0
    %325 = vmatpush1.bf16.msra.mxu0 0
    %326 = vmatprep.subr.bf16.mxu0 0
    %327 = vmatpush1.bf16.msra.mxu0 0
    %328 = vmatprep.subr.bf16.mxu0 0
    %329 = vmatpush1.bf16.msra.mxu0 0
    %330 = vmatprep.subr.bf16.mxu0 0
    %331 = vmatpush1.bf16.msra.mxu0 0
    %332 = vmatprep.subr.bf16.mxu0 0
    %333 = vmatpush1.bf16.msra.mxu0 0
    %334 = vmatprep.subr.bf16.mxu0 0
    %335 = vmatpush1.bf16.msra.mxu0 0
    %336 = vmatprep.subr.bf16.mxu0 0
    %337 = vmatpush1.bf16.msra.mxu0 0
    %338 = vmatprep.subr.bf16.mxu0 0
    %339 = vmatpush1.bf16.msra.mxu0 0
    %340 = vmatprep.subr.bf16.mxu0 0
    %341 = vmatpush1.bf16.msra.mxu0 0
    %342 = vmatprep.subr.bf16.mxu0 0
    %343 = vmatpush1.bf16.msra.mxu0 0
    %344 = vmatprep.subr.bf16.mxu0 0
    %345 = vmatpush1.bf16.msra.mxu0 0
    %346 = vmatprep.mubr.bf16.mxu0 0
    %347 = vmatmul.mubr.bf16.gmra.mrb[0].mxu0 %v312
    %v348 = vpop.f32.mrb[0].mxu0
    %v349 = vadd.f32 0.0, %v348
    %v350 = vpop.f32.mrb[0].mxu0
    %v351 = vpop.f32.mrb[0].mxu0
    %v352 = vpop.f32.mrb[0].mxu0
    %353 = vdwg.mxu0
    %v354 = vadd.f32 %v138, %v349
    %v355 = vxor.u32 %v354, 2147483648
    %v356 = vmul.f32 %v355, 1.442695
    %v357 = vpow.pop %v356
    %v358 = vadd.f32 %v357, 1.0
    %v359 = vrcp.pop %v358
    %v360 = vmul.f32 1.0, %v359
    %v361 = vtanh.pop %v354
    %v362 = vmul.f32 %v360, %v294
    %364 = vrot.lane.b32.xlu0 %v361, 64
    %v365 = vpop.permute.xlu0 %364
    %v367 = vmul.f32 %v360, %v365
    %369 = vrot.lane.b32.xlu0 %v367, 32
    %v370 = vpop.permute.xlu0 %369
    %v372 = vadd.f32 %v362, %v370
    %v373 = vtanh.pop %v372
    %375 = vrot.lane.b32.xlu0 %v373, 64
    %v376 = vpop.permute.xlu0 %375
    %v378 = vmul.f32 %v360, %v376
    %380 = vrot.lane.b32.xlu0 %v378, 32
    %v381 = vpop.permute.xlu0 %380
    %s383 = scalar_lea.vmem [#allocation2], 16
    %384 = vst.msk [vmem:[%s383] sm:$0xff] %vm155, %v381
    %v385 = vpack.c.bf16 %v378, %v378
    %387 = vrot.lane.b32.xlu0 %v385, 32
    %v388 = vpop.permute.xlu0 %387
    %v390 = vsel %vm155, %v388, 0
    %392 = vmatprep.subr.bf16.mxu0 0
    %393 = vmatpush1.bf16.msra.mxu0 %v151
    %394 = vmatprep.subr.bf16.mxu0 0
    %395 = vmatpush1.bf16.msra.mxu0 %v152
    %396 = vmatprep.subr.bf16.mxu0 0
    %397 = vmatpush1.bf16.msra.mxu0 0
    %398 = vmatprep.subr.bf16.mxu0 0
    %399 = vmatpush1.bf16.msra.mxu0 0
    %400 = vmatprep.subr.bf16.mxu0 0
    %401 = vmatpush1.bf16.msra.mxu0 0
    %402 = vmatprep.subr.bf16.mxu0 0
    %403 = vmatpush1.bf16.msra.mxu0 0
    %404 = vmatprep.subr.bf16.mxu0 0
    %405 = vmatpush1.bf16.msra.mxu0 0
    %406 = vmatprep.subr.bf16.mxu0 0
    %407 = vmatpush1.bf16.msra.mxu0 0
    %408 = vmatprep.subr.bf16.mxu0 0
    %409 = vmatpush1.bf16.msra.mxu0 0
    %410 = vmatprep.subr.bf16.mxu0 0
    %411 = vmatpush1.bf16.msra.mxu0 0
    %412 = vmatprep.subr.bf16.mxu0 0
    %413 = vmatpush1.bf16.msra.mxu0 0
    %414 = vmatprep.subr.bf16.mxu0 0
    %415 = vmatpush1.bf16.msra.mxu0 0
    %416 = vmatprep.subr.bf16.mxu0 0
    %417 = vmatpush1.bf16.msra.mxu0 0
    %418 = vmatprep.subr.bf16.mxu0 0
    %419 = vmatpush1.bf16.msra.mxu0 0
    %420 = vmatprep.subr.bf16.mxu0 0
    %421 = vmatpush1.bf16.msra.mxu0 0
    %422 = vmatprep.subr.bf16.mxu0 0
    %423 = vmatpush1.bf16.msra.mxu0 0
    %424 = vmatprep.mubr.bf16.mxu0 0
    %425 = vmatmul.mubr.bf16.gmra.mrb[0].mxu0 %v390
    %v426 = vpop.f32.mrb[0].mxu0
    %v427 = vadd.f32 0.0, %v426
    %v428 = vpop.f32.mrb[0].mxu0
    %v429 = vpop.f32.mrb[0].mxu0
    %v430 = vpop.f32.mrb[0].mxu0
    %431 = vdwg.mxu0
    %v432 = vadd.f32 %v138, %v427
    %v433 = vxor.u32 %v432, 2147483648
    %v434 = vmul.f32 %v433, 1.442695
    %v435 = vpow.pop %v434
    %v436 = vadd.f32 %v435, 1.0
    %v437 = vrcp.pop %v436
    %v438 = vmul.f32 1.0, %v437
    %v439 = vtanh.pop %v432
    %v440 = vmul.f32 %v438, %v372
    %442 = vrot.lane.b32.xlu0 %v439, 64
    %v443 = vpop.permute.xlu0 %442
    %v445 = vmul.f32 %v438, %v443
    %447 = vrot.lane.b32.xlu0 %v445, 32
    %v448 = vpop.permute.xlu0 %447
    %v450 = vadd.f32 %v440, %v448
    %v451 = vtanh.pop %v450
    %453 = vrot.lane.b32.xlu0 %v451, 64
    %v454 = vpop.permute.xlu0 %453
    %v456 = vmul.f32 %v438, %v454
    %458 = vrot.lane.b32.xlu0 %v456, 32
    %v459 = vpop.permute.xlu0 %458
    %s461 = scalar_lea.vmem [#allocation2], 24
    %462 = vst.msk [vmem:[%s461] sm:$0xff] %vm155, %v459
    %v463 = vpack.c.bf16 %v456, %v456
    %465 = vrot.lane.b32.xlu0 %v463, 32
    %v466 = vpop.permute.xlu0 %465
    %v468 = vsel %vm155, %v466, 0
    %470 = vmatprep.subr.bf16.mxu0 0
    %471 = vmatpush1.bf16.msra.mxu0 %v151
    %472 = vmatprep.subr.bf16.mxu0 0
    %473 = vmatpush1.bf16.msra.mxu0 %v152
    %474 = vmatprep.subr.bf16.mxu0 0
    %475 = vmatpush1.bf16.msra.mxu0 0
    %476 = vmatprep.subr.bf16.mxu0 0
    %477 = vmatpush1.bf16.msra.mxu0 0
    %478 = vmatprep.subr.bf16.mxu0 0
    %479 = vmatpush1.bf16.msra.mxu0 0
    %480 = vmatprep.subr.bf16.mxu0 0
    %481 = vmatpush1.bf16.msra.mxu0 0
    %482 = vmatprep.subr.bf16.mxu0 0
    %483 = vmatpush1.bf16.msra.mxu0 0
    %484 = vmatprep.subr.bf16.mxu0 0
    %485 = vmatpush1.bf16.msra.mxu0 0
    %486 = vmatprep.subr.bf16.mxu0 0
    %487 = vmatpush1.bf16.msra.mxu0 0
    %488 = vmatprep.subr.bf16.mxu0 0
    %489 = vmatpush1.bf16.msra.mxu0 0
    %490 = vmatprep.subr.bf16.mxu0 0
    %491 = vmatpush1.bf16.msra.mxu0 0
    %492 = vmatprep.subr.bf16.mxu0 0
    %493 = vmatpush1.bf16.msra.mxu0 0
    %494 = vmatprep.subr.bf16.mxu0 0
    %495 = vmatpush1.bf16.msra.mxu0 0
    %496 = vmatprep.subr.bf16.mxu0 0
    %497 = vmatpush1.bf16.msra.mxu0 0
    %498 = vmatprep.subr.bf16.mxu0 0
    %499 = vmatpush1.bf16.msra.mxu0 0
    %500 = vmatprep.subr.bf16.mxu0 0
    %501 = vmatpush1.bf16.msra.mxu0 0
    %502 = vmatprep.mubr.bf16.mxu0 0
    %503 = vmatmul.mubr.bf16.gmra.mrb[0].mxu0 %v468
    %v504 = vpop.f32.mrb[0].mxu0
    %v505 = vadd.f32 0.0, %v504
    %v506 = vpop.f32.mrb[0].mxu0
    %v507 = vpop.f32.mrb[0].mxu0
    %v508 = vpop.f32.mrb[0].mxu0
    %509 = vdwg.mxu0
    %v510 = vadd.f32 %v138, %v505
    %v511 = vxor.u32 %v510, 2147483648
    %v512 = vmul.f32 %v511, 1.442695
    %v513 = vpow.pop %v512
    %v514 = vadd.f32 %v513, 1.0
    %v515 = vrcp.pop %v514
    %v516 = vmul.f32 1.0, %v515
    %v517 = vtanh.pop %v510
    %v518 = vmul.f32 %v516, %v450
    %520 = vrot.lane.b32.xlu0 %v517, 64
    %v521 = vpop.permute.xlu0 %520
    %v523 = vmul.f32 %v516, %v521
    %525 = vrot.lane.b32.xlu0 %v523, 32
    %v526 = vpop.permute.xlu0 %525
    %v528 = vadd.f32 %v518, %v526
    %v529 = vtanh.pop %v528
    %531 = vrot.lane.b32.xlu0 %v529, 64
    %v532 = vpop.permute.xlu0 %531
    %v534 = vmul.f32 %v516, %v532
    %536 = vrot.lane.b32.xlu0 %v534, 32
    %v537 = vpop.permute.xlu0 %536
    %s539 = scalar_lea.vmem [#allocation2], 32
    %540 = vst.msk [vmem:[%s539] sm:$0xff] %vm155, %v537
    %v541 = vpack.c.bf16 %v534, %v534
    %543 = vrot.lane.b32.xlu0 %v541, 32
    %v544 = vpop.permute.xlu0 %543
    %v546 = vsel %vm155, %v544, 0
    %548 = vmatprep.subr.bf16.mxu0 0
    %549 = vmatpush1.bf16.msra.mxu0 %v151
    %550 = vmatprep.subr.bf16.mxu0 0
    %551 = vmatpush1.bf16.msra.mxu0 %v152
    %552 = vmatprep.subr.bf16.mxu0 0
    %553 = vmatpush1.bf16.msra.mxu0 0
    %554 = vmatprep.subr.bf16.mxu0 0
    %555 = vmatpush1.bf16.msra.mxu0 0
    %556 = vmatprep.subr.bf16.mxu0 0
    %557 = vmatpush1.bf16.msra.mxu0 0
    %558 = vmatprep.subr.bf16.mxu0 0
    %559 = vmatpush1.bf16.msra.mxu0 0
    %560 = vmatprep.subr.bf16.mxu0 0
    %561 = vmatpush1.bf16.msra.mxu0 0
    %562 = vmatprep.subr.bf16.mxu0 0
    %563 = vmatpush1.bf16.msra.mxu0 0
    %564 = vmatprep.subr.bf16.mxu0 0
    %565 = vmatpush1.bf16.msra.mxu0 0
    %566 = vmatprep.subr.bf16.mxu0 0
    %567 = vmatpush1.bf16.msra.mxu0 0
    %568 = vmatprep.subr.bf16.mxu0 0
    %569 = vmatpush1.bf16.msra.mxu0 0
    %570 = vmatprep.subr.bf16.mxu0 0
    %571 = vmatpush1.bf16.msra.mxu0 0
    %572 = vmatprep.subr.bf16.mxu0 0
    %573 = vmatpush1.bf16.msra.mxu0 0
    %574 = vmatprep.subr.bf16.mxu0 0
    %575 = vmatpush1.bf16.msra.mxu0 0
    %576 = vmatprep.subr.bf16.mxu0 0
    %577 = vmatpush1.bf16.msra.mxu0 0
    %578 = vmatprep.subr.bf16.mxu0 0
    %579 = vmatpush1.bf16.msra.mxu0 0
    %580 = vmatprep.mubr.bf16.mxu0 0
    %581 = vmatmul.mubr.bf16.gmra.mrb[0].mxu0 %v546
    %v582 = vpop.f32.mrb[0].mxu0
    %v583 = vadd.f32 0.0, %v582
    %v584 = vpop.f32.mrb[0].mxu0
    %v585 = vpop.f32.mrb[0].mxu0
    %v586 = vpop.f32.mrb[0].mxu0
    %587 = vdwg.mxu0
    %v588 = vadd.f32 %v138, %v583
    %v589 = vxor.u32 %v588, 2147483648
    %v590 = vmul.f32 %v589, 1.442695
    %v591 = vpow.pop %v590
    %v592 = vadd.f32 %v591, 1.0
    %v593 = vrcp.pop %v592
    %v594 = vmul.f32 1.0, %v593
    %v595 = vtanh.pop %v588
    %v596 = vmul.f32 %v594, %v528
    %598 = vrot.lane.b32.xlu0 %v595, 64
    %v599 = vpop.permute.xlu0 %598
    %v601 = vmul.f32 %v594, %v599
    %603 = vrot.lane.b32.xlu0 %v601, 32
    %v604 = vpop.permute.xlu0 %603
    %v606 = vadd.f32 %v596, %v604
    %v607 = vtanh.pop %v606
    %609 = vrot.lane.b32.xlu0 %v607, 64
    %v610 = vpop.permute.xlu0 %609
    %v612 = vmul.f32 %v594, %v610
    %614 = vrot.lane.b32.xlu0 %v612, 32
    %v615 = vpop.permute.xlu0 %614
    %s617 = scalar_lea.vmem [#allocation2], 40
    %618 = vst.msk [vmem:[%s617] sm:$0xff] %vm155, %v615
    %v619 = vpack.c.bf16 %v612, %v612
    %621 = vrot.lane.b32.xlu0 %v619, 32
    %v622 = vpop.permute.xlu0 %621
    %v624 = vsel %vm155, %v622, 0
    %626 = vmatprep.subr.bf16.mxu0 0
    %627 = vmatpush1.bf16.msra.mxu0 %v151
    %628 = vmatprep.subr.bf16.mxu0 0
    %629 = vmatpush1.bf16.msra.mxu0 %v152
    %630 = vmatprep.subr.bf16.mxu0 0
    %631 = vmatpush1.bf16.msra.mxu0 0
    %632 = vmatprep.subr.bf16.mxu0 0
    %633 = vmatpush1.bf16.msra.mxu0 0
    %634 = vmatprep.subr.bf16.mxu0 0
    %635 = vmatpush1.bf16.msra.mxu0 0
    %636 = vmatprep.subr.bf16.mxu0 0
    %637 = vmatpush1.bf16.msra.mxu0 0
    %638 = vmatprep.subr.bf16.mxu0 0
    %639 = vmatpush1.bf16.msra.mxu0 0
    %640 = vmatprep.subr.bf16.mxu0 0
    %641 = vmatpush1.bf16.msra.mxu0 0
    %642 = vmatprep.subr.bf16.mxu0 0
    %643 = vmatpush1.bf16.msra.mxu0 0
    %644 = vmatprep.subr.bf16.mxu0 0
    %645 = vmatpush1.bf16.msra.mxu0 0
    %646 = vmatprep.subr.bf16.mxu0 0
    %647 = vmatpush1.bf16.msra.mxu0 0
    %648 = vmatprep.subr.bf16.mxu0 0
    %649 = vmatpush1.bf16.msra.mxu0 0
    %650 = vmatprep.subr.bf16.mxu0 0
    %651 = vmatpush1.bf16.msra.mxu0 0
    %652 = vmatprep.subr.bf16.mxu0 0
    %653 = vmatpush1.bf16.msra.mxu0 0
    %654 = vmatprep.subr.bf16.mxu0 0
    %655 = vmatpush1.bf16.msra.mxu0 0
    %656 = vmatprep.subr.bf16.mxu0 0
    %657 = vmatpush1.bf16.msra.mxu0 0
    %658 = vmatprep.mubr.bf16.mxu0 0
    %659 = vmatmul.mubr.bf16.gmra.mrb[0].mxu0 %v624
    %v660 = vpop.f32.mrb[0].mxu0
    %v661 = vadd.f32 0.0, %v660
    %v662 = vpop.f32.mrb[0].mxu0
    %v663 = vpop.f32.mrb[0].mxu0
    %v664 = vpop.f32.mrb[0].mxu0
    %665 = vdwg.mxu0
    %v666 = vadd.f32 %v138, %v661
    %v667 = vxor.u32 %v666, 2147483648
    %v668 = vmul.f32 %v667, 1.442695
    %v669 = vpow.pop %v668
    %v670 = vadd.f32 %v669, 1.0
    %v671 = vrcp.pop %v670
    %v672 = vmul.f32 1.0, %v671
    %v673 = vtanh.pop %v666
    %v674 = vmul.f32 %v672, %v606
    %676 = vrot.lane.b32.xlu0 %v673, 64
    %v677 = vpop.permute.xlu0 %676
    %v679 = vmul.f32 %v672, %v677
    %681 = vrot.lane.b32.xlu0 %v679, 32
    %v682 = vpop.permute.xlu0 %681
    %v684 = vadd.f32 %v674, %v682
    %v685 = vtanh.pop %v684
    %687 = vrot.lane.b32.xlu0 %v685, 64
    %v688 = vpop.permute.xlu0 %687
    %v690 = vmul.f32 %v672, %v688
    %692 = vrot.lane.b32.xlu0 %v690, 32
    %v693 = vpop.permute.xlu0 %692
    %s695 = scalar_lea.vmem [#allocation2], 48
    %696 = vst.msk [vmem:[%s695] sm:$0xff] %vm155, %v693
    %v697 = vpack.c.bf16 %v690, %v690
    %699 = vrot.lane.b32.xlu0 %v697, 32
    %v700 = vpop.permute.xlu0 %699
    %v702 = vsel %vm155, %v700, 0
    %704 = vmatprep.subr.bf16.mxu0 0
    %705 = vmatpush1.bf16.msra.mxu0 %v151
    %706 = vmatprep.subr.bf16.mxu0 0
    %707 = vmatpush1.bf16.msra.mxu0 %v152
    %708 = vmatprep.subr.bf16.mxu0 0
    %709 = vmatpush1.bf16.msra.mxu0 0
    %710 = vmatprep.subr.bf16.mxu0 0
    %711 = vmatpush1.bf16.msra.mxu0 0
    %712 = vmatprep.subr.bf16.mxu0 0
    %713 = vmatpush1.bf16.msra.mxu0 0
    %714 = vmatprep.subr.bf16.mxu0 0
    %715 = vmatpush1.bf16.msra.mxu0 0
    %716 = vmatprep.subr.bf16.mxu0 0
    %717 = vmatpush1.bf16.msra.mxu0 0
    %718 = vmatprep.subr.bf16.mxu0 0
    %719 = vmatpush1.bf16.msra.mxu0 0
    %720 = vmatprep.subr.bf16.mxu0 0
    %721 = vmatpush1.bf16.msra.mxu0 0
    %722 = vmatprep.subr.bf16.mxu0 0
    %723 = vmatpush1.bf16.msra.mxu0 0
    %724 = vmatprep.subr.bf16.mxu0 0
    %725 = vmatpush1.bf16.msra.mxu0 0
    %726 = vmatprep.subr.bf16.mxu0 0
    %727 = vmatpush1.bf16.msra.mxu0 0
    %728 = vmatprep.subr.bf16.mxu0 0
    %729 = vmatpush1.bf16.msra.mxu0 0
    %730 = vmatprep.subr.bf16.mxu0 0
    %731 = vmatpush1.bf16.msra.mxu0 0
    %732 = vmatprep.subr.bf16.mxu0 0
    %733 = vmatpush1.bf16.msra.mxu0 0
    %734 = vmatprep.subr.bf16.mxu0 0
    %735 = vmatpush1.bf16.msra.mxu0 0
    %736 = vmatprep.mubr.bf16.mxu0 0
    %737 = vmatmul.mubr.bf16.gmra.mrb[0].mxu0 %v702
    %v738 = vpop.f32.mrb[0].mxu0
    %v739 = vadd.f32 0.0, %v738
    %v740 = vpop.f32.mrb[0].mxu0
    %v741 = vpop.f32.mrb[0].mxu0
    %v742 = vpop.f32.mrb[0].mxu0
    %743 = vdwg.mxu0
    %v744 = vadd.f32 %v138, %v739
    %v745 = vxor.u32 %v744, 2147483648
    %v746 = vmul.f32 %v745, 1.442695
    %v747 = vpow.pop %v746
    %v748 = vadd.f32 %v747, 1.0
    %v749 = vrcp.pop %v748
    %v750 = vmul.f32 1.0, %v749
    %v751 = vtanh.pop %v744
    %v752 = vmul.f32 %v750, %v684
    %754 = vrot.lane.b32.xlu0 %v751, 64
    %v755 = vpop.permute.xlu0 %754
    %v757 = vmul.f32 %v750, %v755
    %759 = vrot.lane.b32.xlu0 %v757, 32
    %v760 = vpop.permute.xlu0 %759
    %v762 = vadd.f32 %v752, %v760
    %v763 = vtanh.pop %v762
    %765 = vrot.lane.b32.xlu0 %v763, 64
    %v766 = vpop.permute.xlu0 %765
    %v768 = vmul.f32 %v750, %v766
    %770 = vrot.lane.b32.xlu0 %v768, 32
    %v771 = vpop.permute.xlu0 %770
    %s773 = scalar_lea.vmem [#allocation2], 56
    %774 = vst.msk [vmem:[%s773] sm:$0xff] %vm155, %v771
    %v775 = vld [vmem:[#allocation2] sm:$0xff]
    %v776 = vld [vmem:[#allocation2 + $0x8] sm:$0xff]
    %v777 = vld [vmem:[#allocation2 + $0x10] sm:$0xff]
    %v778 = vld [vmem:[#allocation2 + $0x18] sm:$0xff]
    %v779 = vld [vmem:[#allocation2 + $0x20] sm:$0xff]
    %v780 = vld [vmem:[#allocation2 + $0x28] sm:$0xff]
    %v781 = vld [vmem:[#allocation2 + $0x30] sm:$0xff]
    %v782 = vld [vmem:[#allocation2 + $0x38] sm:$0xff]
    %v783 = vpack.c.bf16 %v776, %v775
    %v784 = vpack.c.bf16 %v778, %v777
    %v785 = vpack.c.bf16 %v780, %v779
    %v786 = vpack.c.bf16 %v782, %v781
    %v787 = vld [vmem:[#allocation9] sm:$0xf]
    %v788 = vld [vmem:[#allocation9 + $0x4] sm:$0xf]
    %v789 = vld [vmem:[#allocation9 + $0x8] sm:$0xf]
    %v790 = vld [vmem:[#allocation9 + $0xc] sm:$0xf]
    %v791 = vld [vmem:[%s5] sm:$0x1]
    %v793 = vlaneseq
    %v794 = vshrl.u32 %v793, 7
    %v795 = vsub.s32 0, %v794
    %v796 = vrot.slane %v791, %v795
    %v802 = vunpack.c.l.b16 %v787
    %v803 = vunpack.c.l.b16 %v788
    %v804 = vunpack.c.l.b16 %v789
    %v805 = vunpack.c.l.b16 %v790
    %v806 = vpack.c.b16 %v803, %v802
    %v807 = vpack.c.b16 %v805, %v804
    %v811 = vsel %vm155, %v783, 0
    %v814 = vsel %vm155, %v784, 0
    %v817 = vsel %vm155, %v785, 0
    %v820 = vsel %vm155, %v786, 0
    %822 = vmatprep.subr.bf16.mxu0 0
    %823 = vmatpush1.bf16.msra.mxu0 %v806
    %824 = vmatprep.subr.bf16.mxu0 0
    %825 = vmatpush1.bf16.msra.mxu0 %v807
    %826 = vmatprep.subr.bf16.mxu0 0
    %827 = vmatpush1.bf16.msra.mxu0 0
    %828 = vmatprep.subr.bf16.mxu0 0
    %829 = vmatpush1.bf16.msra.mxu0 0
    %830 = vmatprep.subr.bf16.mxu0 0
    %831 = vmatpush1.bf16.msra.mxu0 0
    %832 = vmatprep.subr.bf16.mxu0 0
    %833 = vmatpush1.bf16.msra.mxu0 0
    %834 = vmatprep.subr.bf16.mxu0 0
    %835 = vmatpush1.bf16.msra.mxu0 0
    %836 = vmatprep.subr.bf16.mxu0 0
    %837 = vmatpush1.bf16.msra.mxu0 0
    %838 = vmatprep.subr.bf16.mxu0 0
    %839 = vmatpush1.bf16.msra.mxu0 0
    %840 = vmatprep.subr.bf16.mxu0 0
    %841 = vmatpush1.bf16.msra.mxu0 0
    %842 = vmatprep.subr.bf16.mxu0 0
    %843 = vmatpush1.bf16.msra.mxu0 0
    %844 = vmatprep.subr.bf16.mxu0 0
    %845 = vmatpush1.bf16.msra.mxu0 0
    %846 = vmatprep.subr.bf16.mxu0 0
    %847 = vmatpush1.bf16.msra.mxu0 0
    %848 = vmatprep.subr.bf16.mxu0 0
    %849 = vmatpush1.bf16.msra.mxu0 0
    %850 = vmatprep.subr.bf16.mxu0 0
    %851 = vmatpush1.bf16.msra.mxu0 0
    %852 = vmatprep.subr.bf16.mxu0 0
    %853 = vmatpush1.bf16.msra.mxu0 0
    %854 = vmatprep.mubr.bf16.mxu0 0
    %855 = vmatmul.mubr.bf16.gmra.mrb[0].mxu0 %v811
    %v856 = vpop.f32.mrb[0].mxu0
    %v857 = vadd.f32 %v796, %v856
    %v858 = vpop.f32.mrb[0].mxu0
    %v859 = vpop.f32.mrb[0].mxu0
    %v860 = vadd.f32 %v796, %v859
    %v861 = vpop.f32.mrb[0].mxu0
    %862 = vmatprep.mubr.bf16.mxu0 0
    %863 = vmatmul.mubr.bf16.gmra.mrb[0].mxu0 %v814
    %v864 = vpop.f32.mrb[0].mxu0
    %v865 = vadd.f32 %v796, %v864
    %v866 = vpop.f32.mrb[0].mxu0
    %v867 = vpop.f32.mrb[0].mxu0
    %v868 = vadd.f32 %v796, %v867
    %v869 = vpop.f32.mrb[0].mxu0
    %870 = vmatprep.mubr.bf16.mxu0 0
    %871 = vmatmul.mubr.bf16.gmra.mrb[0].mxu0 %v817
    %v872 = vpop.f32.mrb[0].mxu0
    %v873 = vadd.f32 %v796, %v872
    %v874 = vpop.f32.mrb[0].mxu0
    %v875 = vpop.f32.mrb[0].mxu0
    %v876 = vadd.f32 %v796, %v875
    %v877 = vpop.f32.mrb[0].mxu0
    %878 = vmatprep.mubr.bf16.mxu0 0
    %879 = vmatmul.mubr.bf16.gmra.mrb[0].mxu0 %v820
    %v880 = vpop.f32.mrb[0].mxu0
    %v881 = vadd.f32 %v796, %v880
    %v882 = vpop.f32.mrb[0].mxu0
    %v883 = vpop.f32.mrb[0].mxu0
    %v884 = vadd.f32 %v796, %v883
    %v885 = vpop.f32.mrb[0].mxu0
    %886 = vdwg.mxu0
    %v887 = vxor.u32 %v857, 2147483648
    %v888 = vxor.u32 %v860, 2147483648
    %v889 = vxor.u32 %v865, 2147483648
    %v890 = vxor.u32 %v868, 2147483648
    %v891 = vxor.u32 %v873, 2147483648
    %v892 = vxor.u32 %v876, 2147483648
    %v893 = vxor.u32 %v881, 2147483648
    %v894 = vxor.u32 %v884, 2147483648
    %v895 = vmul.f32 %v887, 1.442695
    %v896 = vpow.pop %v895
    %v897 = vmul.f32 %v888, 1.442695
    %v898 = vpow.pop %v897
    %v899 = vmul.f32 %v889, 1.442695
    %v900 = vpow.pop %v899
    %v901 = vmul.f32 %v890, 1.442695
    %v902 = vpow.pop %v901
    %v903 = vmul.f32 %v891, 1.442695
    %v904 = vpow.pop %v903
    %v905 = vmul.f32 %v892, 1.442695
    %v906 = vpow.pop %v905
    %v907 = vmul.f32 %v893, 1.442695
    %v908 = vpow.pop %v907
    %v909 = vmul.f32 %v894, 1.442695
    %v910 = vpow.pop %v909
    %v911 = vadd.f32 %v896, 1.0
    %v912 = vadd.f32 %v898, 1.0
    %v913 = vadd.f32 %v900, 1.0
    %v914 = vadd.f32 %v902, 1.0
    %v915 = vadd.f32 %v904, 1.0
    %v916 = vadd.f32 %v906, 1.0
    %v917 = vadd.f32 %v908, 1.0
    %v918 = vadd.f32 %v910, 1.0
    %v919 = vrcp.pop %v911
    %v920 = vmul.f32 1.0, %v919
    %v921 = vrcp.pop %v912
    %v922 = vmul.f32 1.0, %v921
    %v923 = vrcp.pop %v913
    %v924 = vmul.f32 1.0, %v923
    %v925 = vrcp.pop %v914
    %v926 = vmul.f32 1.0, %v925
    %v927 = vrcp.pop %v915
    %v928 = vmul.f32 1.0, %v927
    %v929 = vrcp.pop %v916
    %v930 = vmul.f32 1.0, %v929
    %v931 = vrcp.pop %v917
    %v932 = vmul.f32 1.0, %v931
    %v933 = vrcp.pop %v918
    %v934 = vmul.f32 1.0, %v933
    %935 = vst [vmem:[#allocation11] sm:$0xff] %v920
    %936 = vst [vmem:[#allocation11 + $0x8] sm:$0xff] %v922
    %937 = vst [vmem:[#allocation11 + $0x10] sm:$0xff] %v924
    %938 = vst [vmem:[#allocation11 + $0x18] sm:$0xff] %v926
    %939 = vst [vmem:[#allocation11 + $0x20] sm:$0xff] %v928
    %940 = vst [vmem:[#allocation11 + $0x28] sm:$0xff] %v930
    %941 = vst [vmem:[#allocation11 + $0x30] sm:$0xff] %v932
    %942 = vst [vmem:[#allocation11 + $0x38] sm:$0xff] %v934
    // Predicated region
    $region42: #{tpu_custom_call.1} parent=1 // pred_check
      _
    $region43: #{tpu_custom_call.1} parent=1 // pred_check_branch
      %944 = sbr.rel (0) target = $region45
    $region44: #{tpu_custom_call.1} parent=1 // pred_region
      %s946 = ssub.s32 1024, 1024
      %947 = vsyncadd [#allocation5], %s946
      %s948 = sshll.u32 [#allocation11], 4
      %s949 = int_to_ptr.vmem [resolvable:$true] %s948
      %954 = dma.vmem_to_hbm [thread:$0]  %s949, 1024, %s6, [#allocation5], 128, 128, 8
    $region45: #{tpu_custom_call.1} parent=1 // pred_fallthru
      _
    // Predicated region
    $region46: #{tpu_custom_call.1} parent=1 // pred_check
      _
    $region47: #{tpu_custom_call.1} parent=1 // pred_check_branch
      %956 = sbr.rel (0) target = $region49
    $region48: #{tpu_custom_call.1} parent=1 // pred_region
      %957 = dma.done [#allocation5], 1024
    $region49: #{tpu_custom_call.1} parent=1 // pred_fallthru
      _
    %958 = vsyncpa [#allocation4], 1
    %959 = vsyncpa [#allocation7], 1
    %960 = vsyncpa [#allocation10], 1
    %961 = vsyncpa [#allocation5], 1

</llo_original>
